<compile_context>
chip_gen: v7x
topology: tpu7x:2x2x1
jax: 0.10.0
libtpu: 0.0.40
codegen_flags: <defaults>
</compile_context>

<pallas_src>
import jax
import jax.numpy as jnp
from jax.experimental import pallas as pl
from jax.experimental.pallas import tpu as pltpu


def _hsigmoid_kernel(x_ref, o_ref):
    # Upcast to f32 for the arithmetic (free — kernel is HBM-bandwidth bound),
    # store back in the output dtype.
    xf = x_ref[...].astype(jnp.float32)
    y = jnp.clip(xf + 3.0, 0.0, 6.0) / 6.0
    o_ref[...] = y.astype(o_ref.dtype)


def _hsigmoid_jnp(x):
    """Fused XLA fallback (small / ragged inputs): single HBM pass already."""
    xf = x.astype(jnp.float32)
    return (jnp.clip(xf + 3.0, 0.0, 6.0) / 6.0).astype(x.dtype)


def _pick_lanes(n):
    """Largest lane width (multiple of 128) that divides n, else None."""
    for lanes in (512, 256, 128):
        if n % lanes == 0:
            return lanes
    return None


def hsigmoid(x, *, target_block_bytes=2 << 20, min_pallas_size=1 << 20):
    """Elementwise hard-sigmoid. Any shape / float dtype; returns same."""
    n = x.size
    lanes = _pick_lanes(n) if n > 0 else None

    # Fast path: small tensors (pallas_call launch + VMEM round-trip dominate)
    # or ragged element counts (avoid extra pad/slice HBM passes).
    if n == 0 or n < min_pallas_size or lanes is None:
        return _hsigmoid_jnp(x)

    itemsize = x.dtype.itemsize
    rows = n // lanes
    x2d = x.reshape(rows, lanes)  # row-major reshape: bitcast, no copy

    # ~2 MiB per block regardless of dtype; rows rounded to the packed-sublane
    # granularity (8 for 32-bit, 16 for 16-bit, 32 for 8-bit dtypes).
    pack = (32 // (itemsize * 8)) * 8
    block_rows = max(pack, (target_block_bytes // (lanes * itemsize)) // pack * pack)
    br = min(block_rows, rows)  # full-extent block for short slabs (always legal)

    grid = (pl.cdiv(rows, br),)  # ragged last row-block masked by Pallas

    out2d = pl.pallas_call(
        _hsigmoid_kernel,
        out_shape=jax.ShapeDtypeStruct((rows, lanes), x.dtype),
        grid_spec=pltpu.PrefetchScalarGridSpec(
            num_scalar_prefetch=0,
            grid=grid,
            in_specs=[pl.BlockSpec((br, lanes), lambda i: (i, 0))],
            out_specs=pl.BlockSpec((br, lanes), lambda i: (i, 0)),
        ),
        compiler_params=pltpu.CompilerParams(
            dimension_semantics=(pltpu.PARALLEL,),
        ),
    )(x2d)

    return out2d.reshape(x.shape)


def hsigmoid_ref(x):
    xf = x.astype(jnp.float32)
    return (jnp.clip(xf + 3.0, 0.0, 6.0) / 6.0).astype(x.dtype)


if __name__ == "__main__":
    key = jax.random.PRNGKey(0)
    k1, k2, k3, k4 = jax.random.split(key, 4)

    # 1) Primary demo: NCHW f32 input, forced through the Pallas kernel.
    x = jax.random.normal(k1, (2, 4, 16, 16), dtype=jnp.float32) * 4.0
    y = jax.block_until_ready(hsigmoid(x, min_pallas_size=0))
    assert y.shape == x.shape and y.dtype == x.dtype
    assert jnp.allclose(y, hsigmoid_ref(x), atol=1e-6), "f32 mismatch vs reference"

    # 2) bf16 input (dtype-scaled block, f32 compute inside the kernel).
    xb = (jax.random.normal(k2, (2, 4, 16, 16), dtype=jnp.float32) * 4.0).astype(jnp.bfloat16)
    yb = jax.block_until_ready(hsigmoid(xb, min_pallas_size=0))
    assert yb.shape == xb.shape and yb.dtype == xb.dtype
    assert jnp.allclose(yb.astype(jnp.float32),
                        hsigmoid_ref(xb).astype(jnp.float32),
                        atol=1e-2), "bf16 mismatch vs reference"

    # 3) Multi-block grid with a partial (masked) last row-block:
    #    rows = 4*258 = 1032 > block_rows = 1024, grid = 2.
    xp = jax.random.normal(k3, (4, 258, 512), dtype=jnp.float32) * 4.0
    yp = jax.block_until_ready(hsigmoid(xp, min_pallas_size=0))
    assert jnp.allclose(yp, hsigmoid_ref(xp), atol=1e-6), "partial-block mismatch"

    # 4) Ragged element count -> fused-XLA fallback (no pad/slice passes).
    xr = jax.random.normal(k4, (3, 5, 7, 11), dtype=jnp.float32) * 4.0
    yr = jax.block_until_ready(hsigmoid(xr))
    assert jnp.allclose(yr, hsigmoid_ref(xr), atol=1e-6), "ragged mismatch"

    print("KERNEL_OK")
</pallas_src>

<mosaic_0001>
module attributes {stable_mosaic.version = 11 : i64} {
  func.func @_hsigmoid_kernel(%arg0: i32, %arg1: memref<4x512xf32, #tpu.memory_space<vmem>>, %arg2: memref<4x512xf32, #tpu.memory_space<vmem>>) attributes {dimension_semantics = [#tpu.dimension_semantics<parallel>], iteration_bounds = array<i64: 1>, scalar_prefetch = 0 : i64, scratch_operands = 0 : i64, tpu.core_type = #tpu.core_type<tc>, window_params = [{transform_indices = @transform_0, window_bounds = array<i64: 4, 512>}, {transform_indices = @transform_1, window_bounds = array<i64: 4, 512>}]} {
    %c0 = arith.constant 0 : index
    %c0_0 = arith.constant 0 : index
    %0 = vector.load %arg1[%c0, %c0_0] : memref<4x512xf32, #tpu.memory_space<vmem>>, vector<4x512xf32>
    %cst = arith.constant 3.000000e+00 : f32
    %1 = vector.broadcast %cst : f32 to vector<4x512xf32>
    %2 = arith.addf %0, %1 : vector<4x512xf32>
    %cst_1 = arith.constant 0.000000e+00 : f32
    %cst_2 = arith.constant 6.000000e+00 : f32
    %3 = vector.broadcast %cst_1 : f32 to vector<4x512xf32>
    %4 = arith.maximumf %3, %2 : vector<4x512xf32>
    %5 = vector.broadcast %cst_2 : f32 to vector<4x512xf32>
    %6 = arith.minimumf %5, %4 : vector<4x512xf32>
    %cst_3 = arith.constant 6.000000e+00 : f32
    %7 = vector.broadcast %cst_3 : f32 to vector<4x512xf32>
    %8 = arith.divf %6, %7 : vector<4x512xf32>
    %c0_4 = arith.constant 0 : index
    %c0_5 = arith.constant 0 : index
    %9 = vector.load %arg2[%c0_4, %c0_5] : memref<4x512xf32, #tpu.memory_space<vmem>>, vector<4x512xf32>
    tpu.vector_store %arg2[%c0_4, %c0_5], %8 {strides = array<i32>} : memref<4x512xf32, #tpu.memory_space<vmem>>, vector<4x512xf32>,
    return
  }
  func.func @transform_0(%arg0: i32) -> (i32, i32) {
    %c0_i32 = arith.constant 0 : i32
    %c0_i32_0 = arith.constant 0 : i32
    return %arg0, %c0_i32 : i32, i32
  }
  func.func @transform_1(%arg0: i32) -> (i32, i32) {
    %c0_i32 = arith.constant 0 : i32
    %c0_i32_0 = arith.constant 0 : i32
    return %arg0, %c0_i32 : i32, i32
  }
}

</mosaic_0001>

<llo_original>
// kernel: tpu_custom_call.1
$region0: #{tpu_custom_call.1}
  #allocation0 [shape = 'u32[]', space=smem, size = 0x4, offset = 0x4, fixed_abs, tag = 'smem constant byte address 0x4 - core index']
  #allocation1 [shape = 'u32[144,128]{1,0:T(1,128)}', space=vmem, size = 0x12000, scoped, tag = 'internal scratch']
  %s0 = inlined_call_operand.hbm [shape: f32[4,512], index: 0, kind: input, shape index: {}]
  %s1 = inlined_call_operand.hbm [shape: f32[4,512], index: 1, kind: output, shape index: {}]
  %s2 = sld [smem:[#allocation0]]
  $region18: #{tpu_custom_call.1} parent=0
    _
  %s4 = ssub.s32 1, %s2
  %s5 = scalar_select 0, %s4, %s2
  $region1: #{tpu_custom_call.1} parent=0
    #allocation2 [shape = 'u8[8192]{0}', space=vmem, size = 0x2000, scoped, tag = 'input window, operand 0, single buffered']
    #allocation3 [shape = 's32[1]{0}', space=sflag, size = 0x4, scoped, tag = 'scoped memory for tpu_custom_call.1']
    #allocation4 [shape = 's32[1]{0}', space=sflag, size = 0x4, scoped, tag = 'scoped memory for tpu_custom_call.1']
    #allocation5 [shape = 'u8[8192]{0}', space=vmem, size = 0x2000, scoped, tag = 'output window, operand 0, single buffered']
    %6 = vsyncpa [#allocation3], 0
    %7 = vsyncpa [#allocation4], 0
    // Predicated region
    $region2: #{tpu_custom_call.1} parent=1 // pred_check
      _
    $region3: #{tpu_custom_call.1} parent=1 // pred_check_branch
      %9 = sbr.rel (0) target = $region5
    $region4: #{tpu_custom_call.1} parent=1 // pred_region
      %s11 = ssub.s32 256, 256
      %12 = vsyncadd [#allocation3], %s11
      %s14 = sshll.u32 [#allocation2], 4
      %s15 = int_to_ptr.vmem [resolvable:$true] %s14
      %17 = dma.hbm_to_vmem [thread:$0]  %s0, 256, %s15, [#allocation3]
    $region5: #{tpu_custom_call.1} parent=1 // pred_fallthru
      _
    // Predicated region
    $region6: #{tpu_custom_call.1} parent=1 // pred_check
      _
    $region7: #{tpu_custom_call.1} parent=1 // pred_check_branch
      %19 = sbr.rel (0) target = $region9
    $region8: #{tpu_custom_call.1} parent=1 // pred_region
      %20 = dma.done [#allocation3], 256
    $region9: #{tpu_custom_call.1} parent=1 // pred_fallthru
      _
    %v21 = vld [vmem:[#allocation2] sm:$0xff]
    %v22 = vld [vmem:[#allocation2 + $0x8] sm:$0xff]
    %v23 = vadd.f32 %v21, 3.0
    %v24 = vadd.f32 %v22, 3.0
    %v25 = vmax.f32 %v23, 0.0
    %v26 = vmax.f32 %v24, 0.0
    %v27 = vmin.f32 %v25, 6.0
    %v28 = vmin.f32 %v26, 6.0
    %v29 = vrcp.pop 6.0
    %v30 = vmul.f32 %v27, %v29
    %v31 = vmul.f32 %v28, %v29
    %32 = vst [vmem:[#allocation5] sm:$0xff] %v30
    %33 = vst [vmem:[#allocation5 + $0x8] sm:$0xff] %v31
    // Predicated region
    $region10: #{tpu_custom_call.1} parent=1 // pred_check
      _
    $region11: #{tpu_custom_call.1} parent=1 // pred_check_branch
      %35 = sbr.rel (0) target = $region13
    $region12: #{tpu_custom_call.1} parent=1 // pred_region
      %s37 = ssub.s32 256, 256
      %38 = vsyncadd [#allocation4], %s37
      %s40 = sshll.u32 [#allocation5], 4
      %s41 = int_to_ptr.vmem [resolvable:$true] %s40
      %43 = dma.vmem_to_hbm [thread:$0]  %s41, 256, %s1, [#allocation4]
    $region13: #{tpu_custom_call.1} parent=1 // pred_fallthru
      _
    // Predicated region
    $region14: #{tpu_custom_call.1} parent=1 // pred_check
      _
    $region15: #{tpu_custom_call.1} parent=1 // pred_check_branch
      %45 = sbr.rel (0) target = $region17
    $region16: #{tpu_custom_call.1} parent=1 // pred_region
      %46 = dma.done [#allocation4], 256
    $region17: #{tpu_custom_call.1} parent=1 // pred_fallthru
      _
    %47 = vsyncpa [#allocation3], 1
    %48 = vsyncpa [#allocation4], 1

</llo_original>
